<compile_context>
chip_gen: v7x
topology: tpu7x:2x2x1
jax: 0.10.0
libtpu: 0.0.40
codegen_flags: <defaults>
</compile_context>

<pallas_src>
import numpy as np

import jax
import jax.numpy as jnp
from jax.experimental import pallas as pl
from jax.experimental.pallas import tpu as pltpu

KSIZE = 7
PAD = (KSIZE - 1) // 2
LANE = 128


def _attention_gate_kernel(b_ref, a_ref, x_ref, o_ref):
    # b_ref: SMEM (1,) f32              BN-folded conv bias
    # a_ref: VMEM (2*HW, HW) bf16       stacked BN-folded unrolled-conv matrix
    # x_ref: VMEM (nb, C, HW)           lane-dense input block
    # o_ref: VMEM (nb, C, HW)           lane-dense output block
    x_in = x_ref[...]                                          # (nb, C, HW)

    # --- ZPool over the channel (sublane) axis.  ZPool-mean's 1/C is folded
    # into A on the host, so a plain sum suffices (saves a full-lane VPU mul).
    zmax = jnp.max(x_in, axis=1)                               # (nb, HW)
    zsum = jnp.sum(x_in.astype(jnp.float32), axis=1)           # (nb, HW) f32 acc

    # --- 7x7 conv (2 -> 1 ch) + folded BN as ONE fused bf16 MXU matmul:
    #       conv = [zmax | zsum] @ [[A_max], [A_mean/C]] + bias
    lhs = jnp.concatenate(
        [zmax.astype(jnp.bfloat16), zsum.astype(jnp.bfloat16)], axis=-1)
    conv = jnp.dot(lhs, a_ref[...],
                   preferred_element_type=jnp.float32) + b_ref[0]   # (nb, HW)

    scale = jax.nn.sigmoid(conv)                               # (nb, HW) f32

    # --- Epilogue: re-read x from VMEM instead of keeping the copy from the
    # top of the kernel live across the matmul (avoids vreg spills), gate in
    # the input dtype (bf16-native VPUs on v6e/v7x), store lane-dense.
    o_ref[...] = (x_ref[...] * scale[:, None, :].astype(x_ref.dtype)
                  ).astype(o_ref.dtype)


_A_CACHE = {}


def _build_conv_matrix(w_folded, H, W, HW_pad, C):
    """Host-side (numpy) stacked unrolled-conv matrix, shape (2*HW_pad, HW_pad).

    For row-major flattened zmax, zsum in R^{HW_pad}:
        conv_flat = concat([zmax, zsum]) @ A + bias
    Zero padding of the 7x7 conv, the BN scale (already folded into w_folded)
    and ZPool-mean's 1/C are all baked in.  Built with numpy (no traced
    scatters) and cached per (weights, H, W).
    """
    key = (H, W, HW_pad, C, w_folded.tobytes())
    hit = _A_CACHE.get(key)
    if hit is not None:
        return hit
    A = np.zeros((2, HW_pad, HW_pad), np.float32)
    for dy in range(-PAD, PAD + 1):
        ys = np.arange(max(0, -dy), min(H, H - dy))
        if ys.size == 0:
            continue
        for dx in range(-PAD, PAD + 1):
            xs = np.arange(max(0, -dx), min(W, W - dx))
            if xs.size == 0:
                continue
            p = (ys[:, None] * W + xs[None, :]).ravel()                 # output idx
            q = ((ys[:, None] + dy) * W + (xs[None, :] + dx)).ravel()   # input idx
            for c in range(2):
                np.add.at(A[c], (q, p), w_folded[c, dy + PAD, dx + PAD])
    A[1] *= 1.0 / C            # fold ZPool-mean's 1/C into the zsum half
    out = np.ascontiguousarray(A.reshape(2 * HW_pad, HW_pad))
    _A_CACHE[key] = out
    return out


def _vmem_capacity_bytes():
    try:
        return int(pltpu.get_tpu_info().vmem_capacity_bytes)
    except Exception:
        return 64 * 1024 * 1024          # conservative (v7x per-TensorCore)


def _is_dual_tensorcore():
    """True only on chips with 2 TensorCores per chip (v4/v5p megacore, v7x)."""
    try:
        kind = jax.devices()[0].device_kind.lower()
    except Exception:
        return False
    if "v5 lite" in kind or "v5e" in kind or "v6" in kind:
        return False
    return ("v4" in kind or "v5p" in kind or "v7" in kind or "tpu7" in kind
            or kind.strip() == "tpu v5")


def _pick_batch_block(N, per_batch_bytes, a_bytes, vmem_cap, dual_tc):
    """Batch elements per grid step for a mem-bound kernel: largest x block up
    to ~4 MiB that leaves room for double-buffered in/out + resident A.  The
    >=2-grid-step constraint applies only on dual-TC chips; on single-TC
    (v5e/v6e) it would just double per-step overhead."""
    budget = max(0, int(0.8 * vmem_cap) - 2 * a_bytes - (4 << 20))
    target = min(4 << 20, max(per_batch_bytes, budget // 4))
    nb = max(1, min(N, target // per_batch_bytes))
    if dual_tc and N >= 2:
        nb = max(1, min(nb, N // 2))     # keep >= 2 steps so both TCs get work
    while N % nb:
        nb -= 1
    return nb


def attention_gate(x, conv_w, bn_gamma, bn_beta, bn_mean, bn_var, eps=1e-5):
    """x: (N, C, H, W); conv_w: (1, 2, 7, 7); BN params: shape (1,) each.

    Note: the conv/BN parameters are folded into a host-built constant matrix
    (numpy), so they must be concrete arrays (fixed inference weights)."""
    N, C, H, W = x.shape
    HW = H * W
    HW_pad = ((HW + LANE - 1) // LANE) * LANE        # lane-dense output stores

    # --- Host-side constant prep: fold eval-mode BN into the conv weights ---
    w = np.asarray(jax.device_get(conv_w), np.float32).reshape(2, KSIZE, KSIZE)
    g = np.asarray(jax.device_get(bn_gamma), np.float32)
    b = np.asarray(jax.device_get(bn_beta), np.float32)
    mu = np.asarray(jax.device_get(bn_mean), np.float32)
    var = np.asarray(jax.device_get(bn_var), np.float32)
    s = float(g[0] / np.sqrt(var[0] + eps))
    w_folded = (w * s).astype(np.float32)
    bias = np.float32(b[0] - mu[0] * s)

    a_np = _build_conv_matrix(w_folded, H, W, HW_pad, C)       # (2*HW_pad, HW_pad)
    a_mat = jnp.asarray(a_np, dtype=jnp.bfloat16)              # bf16: half VMEM
    b_vec = jnp.asarray([bias], dtype=jnp.float32)

    x_flat = x.reshape(N, C, HW)
    if HW_pad != HW:
        x_flat = jnp.pad(x_flat, ((0, 0), (0, 0), (0, HW_pad - HW)))

    # --- Tiling policy + explicit VMEM budget ---
    per_batch = C * HW_pad * x.dtype.itemsize
    a_bytes = int(a_mat.size) * 2
    vmem_cap = _vmem_capacity_bytes()
    nb = _pick_batch_block(N, per_batch, a_bytes, vmem_cap, _is_dual_tensorcore())
    block_bytes = nb * per_batch
    vmem_limit = int(min(vmem_cap,
                         max(32 << 20, 4 * block_bytes + 2 * a_bytes + (8 << 20))))

    out_flat = pl.pallas_call(
        _attention_gate_kernel,
        out_shape=jax.ShapeDtypeStruct((N, C, HW_pad), x.dtype),
        grid_spec=pltpu.PrefetchScalarGridSpec(
            num_scalar_prefetch=0,
            grid=(N // nb,),
            in_specs=[
                pl.BlockSpec(memory_space=pltpu.MemorySpace.SMEM),      # bias
                pl.BlockSpec((2 * HW_pad, HW_pad), lambda i: (0, 0)),   # A resident
                pl.BlockSpec((nb, C, HW_pad), lambda i: (i, 0, 0)),     # x block
            ],
            out_specs=pl.BlockSpec((nb, C, HW_pad), lambda i: (i, 0, 0)),
        ),
        compiler_params=pltpu.CompilerParams(
            dimension_semantics=("parallel",),
            vmem_limit_bytes=vmem_limit),
    )(b_vec, a_mat, x_flat)

    if HW_pad != HW:
        out_flat = out_flat[..., :HW]
    return out_flat.reshape(N, C, H, W)


def attention_gate_ref(x, conv_w, bn_gamma, bn_beta, bn_mean, bn_var, eps=1e-5):
    """Pure-JAX reference mirroring the PyTorch forward (eval-mode BN)."""
    a = jnp.max(x, axis=1, keepdims=True)
    m = jnp.mean(x, axis=1, keepdims=True)
    comp = jnp.concatenate([a, m], axis=1)                     # (N, 2, H, W)
    y = jax.lax.conv_general_dilated(
        comp, conv_w, window_strides=(1, 1),
        padding=[(PAD, PAD), (PAD, PAD)],
        dimension_numbers=("NCHW", "OIHW", "NCHW"),
        precision=jax.lax.Precision.HIGHEST)
    s = bn_gamma / jnp.sqrt(bn_var + eps)
    y = y * s[None, :, None, None] + (bn_beta - bn_mean * s)[None, :, None, None]
    return x * jax.nn.sigmoid(y)


if __name__ == "__main__":
    N, C, H, W = 2, 4, 16, 16
    key = jax.random.PRNGKey(0)
    kx, kw = jax.random.split(key)

    x = jax.random.normal(kx, (N, C, H, W), dtype=jnp.float32)
    conv_w = 0.1 * jax.random.normal(kw, (1, 2, KSIZE, KSIZE), dtype=jnp.float32)

    # BatchNorm2d(1) eval-mode affine parameters / running statistics.
    bn_gamma = jnp.array([1.3], jnp.float32)
    bn_beta = jnp.array([0.1], jnp.float32)
    bn_mean = jnp.array([0.05], jnp.float32)
    bn_var = jnp.array([0.9], jnp.float32)

    out = attention_gate(x, conv_w, bn_gamma, bn_beta, bn_mean, bn_var)
    out = jax.block_until_ready(out)

    ref = attention_gate_ref(x, conv_w, bn_gamma, bn_beta, bn_mean, bn_var)
    assert out.shape == (N, C, H, W)
    # bf16 MXU path (per perf feedback) => looser tolerance than the old
    # f32/Precision.HIGHEST version.
    max_err = jnp.max(jnp.abs(out - ref))
    assert jnp.allclose(out, ref, atol=1e-2, rtol=1e-2), f"max abs err = {max_err}"

    print("KERNEL_OK")
</pallas_src>

<mosaic_0001>
module attributes {stable_mosaic.version = 11 : i64} {
  func.func @_attention_gate_kernel(%arg0: i32, %arg1: memref<1xf32, #tpu.memory_space<smem>>, %arg2: memref<512x256xbf16, #tpu.memory_space<vmem>>, %arg3: memref<2x4x256xf32, #tpu.memory_space<vmem>>, %arg4: memref<2x4x256xf32, #tpu.memory_space<vmem>>) attributes {dimension_semantics = [#tpu.dimension_semantics<parallel>], iteration_bounds = array<i64: 1>, scalar_prefetch = 0 : i64, scratch_operands = 0 : i64, tpu.core_type = #tpu.core_type<tc>, window_params = [{transform_indices = @transform_0, window_bounds = array<i64: 1>}, {pipeline_mode = #tpu.pipeline_mode<synchronous>, transform_indices = @transform_1, window_bounds = array<i64: 512, 256>}, {transform_indices = @transform_2, window_bounds = array<i64: 2, 4, 256>}, {transform_indices = @transform_3, window_bounds = array<i64: 2, 4, 256>}]} {
    %c0 = arith.constant 0 : index
    %c0_0 = arith.constant 0 : index
    %c0_1 = arith.constant 0 : index
    %0 = vector.load %arg3[%c0, %c0_0, %c0_1] : memref<2x4x256xf32, #tpu.memory_space<vmem>>, vector<2x4x256xf32>
    %cst = arith.constant dense<0xFF800000> : vector<2x256xf32>
    %1 = vector.multi_reduction <maximumf>, %0, %cst [1] : vector<2x4x256xf32> to vector<2x256xf32>
    %cst_2 = arith.constant dense<0.000000e+00> : vector<2x256xf32>
    %2 = vector.multi_reduction <add>, %0, %cst_2 [1] : vector<2x4x256xf32> to vector<2x256xf32>
    %3 = arith.truncf %1 : vector<2x256xf32> to vector<2x256xbf16>
    %4 = arith.truncf %2 : vector<2x256xf32> to vector<2x256xbf16>
    %5 = tpu.concatenate %3, %4 in 1 : vector<2x256xbf16>, vector<2x256xbf16> -> vector<2x512xbf16>
    %c0_3 = arith.constant 0 : index
    %c0_4 = arith.constant 0 : index
    %6 = vector.load %arg2[%c0_3, %c0_4] : memref<512x256xbf16, #tpu.memory_space<vmem>>, vector<512x256xbf16>
    %cst_5 = arith.constant dense<0.000000e+00> : vector<2x256xf32>
    %7 = tpu.matmul %5, %6, %cst_5 {dimension_numbers = #tpu.dot_dimension_numbers<[1], [0], [0], [1], [0, 0, 1, 1], [], []>} : vector<2x512xbf16>, vector<512x256xbf16>, vector<2x256xf32> -> vector<2x256xf32>
    %c0_6 = arith.constant 0 : index
    %8 = memref.load %arg1[%c0_6] : memref<1xf32, #tpu.memory_space<smem>>
    %9 = vector.broadcast %8 : f32 to vector<2x256xf32>
    %10 = arith.addf %7, %9 : vector<2x256xf32>
    %11 = arith.negf %10 : vector<2x256xf32>
    %12 = math.exp %11 : vector<2x256xf32>
    %cst_7 = arith.constant 1.000000e+00 : f32
    %13 = vector.broadcast %cst_7 : f32 to vector<2x256xf32>
    %14 = arith.addf %13, %12 : vector<2x256xf32>
    %15 = arith.divf %13, %14 : vector<2x256xf32>
    %c0_8 = arith.constant 0 : index
    %c0_9 = arith.constant 0 : index
    %c0_10 = arith.constant 0 : index
    %16 = vector.load %arg3[%c0_8, %c0_9, %c0_10] : memref<2x4x256xf32, #tpu.memory_space<vmem>>, vector<2x4x256xf32>
    %17 = vector.shape_cast %15 : vector<2x256xf32> to vector<2x1x256xf32>
    %18 = vector.broadcast %17 : vector<2x1x256xf32> to vector<2x4x256xf32>
    %19 = arith.mulf %16, %18 : vector<2x4x256xf32>
    %c0_11 = arith.constant 0 : index
    %c0_12 = arith.constant 0 : index
    %c0_13 = arith.constant 0 : index
    %20 = vector.load %arg4[%c0_11, %c0_12, %c0_13] : memref<2x4x256xf32, #tpu.memory_space<vmem>>, vector<2x4x256xf32>
    tpu.vector_store %arg4[%c0_11, %c0_12, %c0_13], %19 {strides = array<i32>} : memref<2x4x256xf32, #tpu.memory_space<vmem>>, vector<2x4x256xf32>,
    return
  }
  func.func @transform_0(%arg0: i32) -> i32 {
    %c0_i32 = arith.constant 0 : i32
    %c0_i32_0 = arith.constant 0 : i32
    return %c0_i32 : i32
  }
  func.func @transform_1(%arg0: i32) -> (i32, i32) {
    %c0_i32 = arith.constant 0 : i32
    %c0_i32_0 = arith.constant 0 : i32
    %c0_i32_1 = arith.constant 0 : i32
    return %c0_i32, %c0_i32_0 : i32, i32
  }
  func.func @transform_2(%arg0: i32) -> (i32, i32, i32) {
    %c0_i32 = arith.constant 0 : i32
    %c0_i32_0 = arith.constant 0 : i32
    %c0_i32_1 = arith.constant 0 : i32
    return %arg0, %c0_i32, %c0_i32_0 : i32, i32, i32
  }
  func.func @transform_3(%arg0: i32) -> (i32, i32, i32) {
    %c0_i32 = arith.constant 0 : i32
    %c0_i32_0 = arith.constant 0 : i32
    %c0_i32_1 = arith.constant 0 : i32
    return %arg0, %c0_i32, %c0_i32_0 : i32, i32, i32
  }
}

</mosaic_0001>

<llo_original>
// kernel: tpu_custom_call.1
$region0: #{tpu_custom_call.1}
  #allocation0 [shape = 'u32[]', space=smem, size = 0x4, offset = 0x4, fixed_abs, tag = 'smem constant byte address 0x4 - core index']
  #allocation1 [shape = 'u32[144,128]{1,0:T(1,128)}', space=vmem, size = 0x12000, scoped, tag = 'internal scratch']
  #allocation2 [shape = 'f32[1]{0:T(128)S(6)}', space=smem, size = 0x200, scoped, tag = 'scoped memory for tpu_custom_call.1']
  %s0 = inlined_call_operand.<no memory space> [shape: f32[1], index: 0, kind: input, shape index: {}]
  %s1 = inlined_call_operand.hbm [shape: bf16[512,256], index: 1, kind: input, shape index: {}]
  %s2 = inlined_call_operand.hbm [shape: f32[2,4,256], index: 2, kind: input, shape index: {}]
  %s3 = inlined_call_operand.hbm [shape: f32[2,4,256], index: 3, kind: output, shape index: {}]
  %s4 = sld [smem:[#allocation0]]
  $region30: #{tpu_custom_call.1} parent=0
    _
  %s6 = ssub.s32 1, %s4
  %s7 = scalar_select 0, %s6, %s4
  %8 = sst [smem:[#allocation2]] %s0
  $region1: #{tpu_custom_call.1} parent=0
    #allocation3 [shape = 'u8[262144]{0}', space=vmem, size = 0x40000, scoped, tag = 'input window, operand 1, single buffered']
    #allocation4 [shape = 's32[1]{0}', space=sflag, size = 0x4, scoped, tag = 'scoped memory for tpu_custom_call.1']
    #allocation5 [shape = 's32[1]{0}', space=sflag, size = 0x4, scoped, tag = 'scoped memory for tpu_custom_call.1']
    #allocation6 [shape = 'u8[8192]{0}', space=vmem, size = 0x2000, scoped, tag = 'input window, operand 2, single buffered']
    #allocation7 [shape = 's32[1]{0}', space=sflag, size = 0x4, scoped, tag = 'scoped memory for tpu_custom_call.1']
    #allocation8 [shape = 'u8[8192]{0}', space=vmem, size = 0x2000, scoped, tag = 'output window, operand 0, single buffered']
    %9 = vsyncpa [#allocation4], 0
    %10 = vsyncpa [#allocation7], 0
    %11 = vsyncpa [#allocation5], 0
    // Predicated region
    $region2: #{tpu_custom_call.1} parent=1 // pred_check
      _
    $region3: #{tpu_custom_call.1} parent=1 // pred_check_branch
      %13 = sbr.rel (0) target = $region5
    $region4: #{tpu_custom_call.1} parent=1 // pred_region
      _
    $region5: #{tpu_custom_call.1} parent=1 // pred_fallthru
      _
    // Predicated region
    $region6: #{tpu_custom_call.1} parent=1 // pred_check
      _
    $region7: #{tpu_custom_call.1} parent=1 // pred_check_branch
      %15 = sbr.rel (0) target = $region9
    $region8: #{tpu_custom_call.1} parent=1 // pred_region
      %s17 = ssub.s32 8192, 8192
      %18 = vsyncadd [#allocation4], %s17
      %s19 = sshll.u32 [#allocation3], 4
      %s20 = int_to_ptr.vmem [resolvable:$true] %s19
      %25 = dma.hbm_to_vmem [thread:$0]  %s1, 8192, %s20, [#allocation4], 128, 128, 8
    $region9: #{tpu_custom_call.1} parent=1 // pred_fallthru
      _
    // Predicated region
    $region10: #{tpu_custom_call.1} parent=1 // pred_check
      _
    $region11: #{tpu_custom_call.1} parent=1 // pred_check_branch
      %27 = sbr.rel (0) target = $region13
    $region12: #{tpu_custom_call.1} parent=1 // pred_region
      %s29 = ssub.s32 256, 256
      %30 = vsyncadd [#allocation7], %s29
      %s31 = sshll.u32 [#allocation6], 4
      %s32 = int_to_ptr.vmem [resolvable:$true] %s31
      %37 = dma.hbm_to_vmem [thread:$0]  %s2, 256, %s32, [#allocation7], 128, 128, 8
    $region13: #{tpu_custom_call.1} parent=1 // pred_fallthru
      _
    // Predicated region
    $region14: #{tpu_custom_call.1} parent=1 // pred_check
      _
    $region15: #{tpu_custom_call.1} parent=1 // pred_check_branch
      %39 = sbr.rel (0) target = $region17
    $region16: #{tpu_custom_call.1} parent=1 // pred_region
      %40 = dma.done [#allocation4], 8192
    $region17: #{tpu_custom_call.1} parent=1 // pred_fallthru
      _
    // Predicated region
    $region18: #{tpu_custom_call.1} parent=1 // pred_check
      _
    $region19: #{tpu_custom_call.1} parent=1 // pred_check_branch
      %42 = sbr.rel (0) target = $region21
    $region20: #{tpu_custom_call.1} parent=1 // pred_region
      %43 = dma.done [#allocation7], 256
    $region21: #{tpu_custom_call.1} parent=1 // pred_fallthru
      _
    %v44 = vld [vmem:[#allocation6] sm:$0xff]
    %v45 = vld [vmem:[#allocation6 + $0x8] sm:$0xff]
    %v48 = vcombine.high %v44, %v44
    %v49 = vcombine.high %v45, %v45
    %vm52 = vcmask 1043456
    %v53 = vsel %vm52, %v44, -inf
    %v54 = vrot.slane %v53, 4
    %v55 = vmax.f32 %v53, %v54
    %v56 = vrot.slane %v55, 2
    %v57 = vmax.f32 %v55, %v56
    %v58 = vrot.slane %v57, 1
    %v59 = vmax.f32 %v57, %v58
    %v60 = vsel %vm52, %v48, -inf
    %v61 = vrot.slane %v60, 4
    %v62 = vmax.f32 %v60, %v61
    %v63 = vrot.slane %v62, 2
    %v64 = vmax.f32 %v62, %v63
    %v65 = vrot.slane %v64, 1
    %v66 = vmax.f32 %v64, %v65
    %v67 = vsel %vm52, %v45, -inf
    %v68 = vrot.slane %v67, 4
    %v69 = vmax.f32 %v67, %v68
    %v70 = vrot.slane %v69, 2
    %v71 = vmax.f32 %v69, %v70
    %v72 = vrot.slane %v71, 1
    %v73 = vmax.f32 %v71, %v72
    %v74 = vsel %vm52, %v49, -inf
    %v75 = vrot.slane %v74, 4
    %v76 = vmax.f32 %v74, %v75
    %v77 = vrot.slane %v76, 2
    %v78 = vmax.f32 %v76, %v77
    %v79 = vrot.slane %v78, 1
    %v80 = vmax.f32 %v78, %v79
    %v81 = vsel %vm52, %v44, 0.0
    %v82 = vrot.slane %v81, 4
    %v83 = vadd.f32 %v81, %v82
    %v84 = vrot.slane %v83, 2
    %v85 = vadd.f32 %v83, %v84
    %v86 = vrot.slane %v85, 1
    %v87 = vadd.f32 %v85, %v86
    %v88 = vsel %vm52, %v48, 0.0
    %v89 = vrot.slane %v88, 4
    %v90 = vadd.f32 %v88, %v89
    %v91 = vrot.slane %v90, 2
    %v92 = vadd.f32 %v90, %v91
    %v93 = vrot.slane %v92, 1
    %v94 = vadd.f32 %v92, %v93
    %v95 = vsel %vm52, %v45, 0.0
    %v96 = vrot.slane %v95, 4
    %v97 = vadd.f32 %v95, %v96
    %v98 = vrot.slane %v97, 2
    %v99 = vadd.f32 %v97, %v98
    %v100 = vrot.slane %v99, 1
    %v101 = vadd.f32 %v99, %v100
    %v102 = vsel %vm52, %v49, 0.0
    %v103 = vrot.slane %v102, 4
    %v104 = vadd.f32 %v102, %v103
    %v105 = vrot.slane %v104, 2
    %v106 = vadd.f32 %v104, %v105
    %v107 = vrot.slane %v106, 1
    %v108 = vadd.f32 %v106, %v107
    %v109 = vpack.c.bf16 %v59, %v59
    %v110 = vpack.c.bf16 %v66, %v66
    %v111 = vpack.c.bf16 %v73, %v73
    %v112 = vpack.c.bf16 %v80, %v80
    %v113 = vpack.c.bf16 %v87, %v87
    %v114 = vpack.c.bf16 %v94, %v94
    %v115 = vpack.c.bf16 %v101, %v101
    %v116 = vpack.c.bf16 %v108, %v108
    %v121 = vunpack.c.l.b16 %v109
    %v122 = vunpack.c.l.b16 %v110
    %v123 = vunpack.c.l.b16 %v111
    %v124 = vunpack.c.l.b16 %v112
    %vm125 = vcmask 1041409
    %v126 = vsel %vm125, %v123, %v121
    %v127 = vsel %vm125, %v124, %v122
    %v128 = vpack.c.b16 %v126, %v126
    %v129 = vpack.c.b16 %v127, %v127
    %v136 = vunpack.c.l.b16 %v113
    %v137 = vunpack.c.l.b16 %v114
    %v138 = vunpack.c.l.b16 %v115
    %v139 = vunpack.c.l.b16 %v116
    %v140 = vsel %vm125, %v138, %v136
    %v141 = vsel %vm125, %v139, %v137
    %v142 = vpack.c.b16 %v140, %v140
    %v143 = vpack.c.b16 %v141, %v141
    %v146 = vld [vmem:[#allocation3] sm:$0xff]
    %v147 = vld [vmem:[#allocation3 + $0x8] sm:$0xff]
    %v148 = vld [vmem:[#allocation3 + $0x10] sm:$0xff]
    %v149 = vld [vmem:[#allocation3 + $0x18] sm:$0xff]
    %v150 = vld [vmem:[#allocation3 + $0x20] sm:$0xff]
    %v151 = vld [vmem:[#allocation3 + $0x28] sm:$0xff]
    %v152 = vld [vmem:[#allocation3 + $0x30] sm:$0xff]
    %v153 = vld [vmem:[#allocation3 + $0x38] sm:$0xff]
    %v154 = vld [vmem:[#allocation3 + $0x40] sm:$0xff]
    %v155 = vld [vmem:[#allocation3 + $0x48] sm:$0xff]
    %v156 = vld [vmem:[#allocation3 + $0x50] sm:$0xff]
    %v157 = vld [vmem:[#allocation3 + $0x58] sm:$0xff]
    %v158 = vld [vmem:[#allocation3 + $0x60] sm:$0xff]
    %v159 = vld [vmem:[#allocation3 + $0x68] sm:$0xff]
    %v160 = vld [vmem:[#allocation3 + $0x70] sm:$0xff]
    %v161 = vld [vmem:[#allocation3 + $0x78] sm:$0xff]
    %v162 = vld [vmem:[#allocation3 + $0x80] sm:$0xff]
    %v163 = vld [vmem:[#allocation3 + $0x88] sm:$0xff]
    %v164 = vld [vmem:[#allocation3 + $0x90] sm:$0xff]
    %v165 = vld [vmem:[#allocation3 + $0x98] sm:$0xff]
    %v166 = vld [vmem:[#allocation3 + $0xa0] sm:$0xff]
    %v167 = vld [vmem:[#allocation3 + $0xa8] sm:$0xff]
    %v168 = vld [vmem:[#allocation3 + $0xb0] sm:$0xff]
    %v169 = vld [vmem:[#allocation3 + $0xb8] sm:$0xff]
    %v170 = vld [vmem:[#allocation3 + $0xc0] sm:$0xff]
    %v171 = vld [vmem:[#allocation3 + $0xc8] sm:$0xff]
    %v172 = vld [vmem:[#allocation3 + $0xd0] sm:$0xff]
    %v173 = vld [vmem:[#allocation3 + $0xd8] sm:$0xff]
    %v174 = vld [vmem:[#allocation3 + $0xe0] sm:$0xff]
    %v175 = vld [vmem:[#allocation3 + $0xe8] sm:$0xff]
    %v176 = vld [vmem:[#allocation3 + $0xf0] sm:$0xff]
    %v177 = vld [vmem:[#allocation3 + $0xf8] sm:$0xff]
    %v178 = vld [vmem:[#allocation3 + $0x100] sm:$0xff]
    %v179 = vld [vmem:[#allocation3 + $0x108] sm:$0xff]
    %v180 = vld [vmem:[#allocation3 + $0x110] sm:$0xff]
    %v181 = vld [vmem:[#allocation3 + $0x118] sm:$0xff]
    %v182 = vld [vmem:[#allocation3 + $0x120] sm:$0xff]
    %v183 = vld [vmem:[#allocation3 + $0x128] sm:$0xff]
    %v184 = vld [vmem:[#allocation3 + $0x130] sm:$0xff]
    %v185 = vld [vmem:[#allocation3 + $0x138] sm:$0xff]
    %v186 = vld [vmem:[#allocation3 + $0x140] sm:$0xff]
    %v187 = vld [vmem:[#allocation3 + $0x148] sm:$0xff]
    %v188 = vld [vmem:[#allocation3 + $0x150] sm:$0xff]
    %v189 = vld [vmem:[#allocation3 + $0x158] sm:$0xff]
    %v190 = vld [vmem:[#allocation3 + $0x160] sm:$0xff]
    %v191 = vld [vmem:[#allocation3 + $0x168] sm:$0xff]
    %v192 = vld [vmem:[#allocation3 + $0x170] sm:$0xff]
    %v193 = vld [vmem:[#allocation3 + $0x178] sm:$0xff]
    %v194 = vld [vmem:[#allocation3 + $0x180] sm:$0xff]
    %v195 = vld [vmem:[#allocation3 + $0x188] sm:$0xff]
    %v196 = vld [vmem:[#allocation3 + $0x190] sm:$0xff]
    %v197 = vld [vmem:[#allocation3 + $0x198] sm:$0xff]
    %v198 = vld [vmem:[#allocation3 + $0x1a0] sm:$0xff]
    %v199 = vld [vmem:[#allocation3 + $0x1a8] sm:$0xff]
    %v200 = vld [vmem:[#allocation3 + $0x1b0] sm:$0xff]
    %v201 = vld [vmem:[#allocation3 + $0x1b8] sm:$0xff]
    %v202 = vld [vmem:[#allocation3 + $0x1c0] sm:$0xff]
    %v203 = vld [vmem:[#allocation3 + $0x1c8] sm:$0xff]
    %v204 = vld [vmem:[#allocation3 + $0x1d0] sm:$0xff]
    %v205 = vld [vmem:[#allocation3 + $0x1d8] sm:$0xff]
    %v206 = vld [vmem:[#allocation3 + $0x1e0] sm:$0xff]
    %v207 = vld [vmem:[#allocation3 + $0x1e8] sm:$0xff]
    %v208 = vld [vmem:[#allocation3 + $0x1f0] sm:$0xff]
    %v209 = vld [vmem:[#allocation3 + $0x1f8] sm:$0xff]
    %s210 = sld [smem:[#allocation2]]
    %v211 = vstv %s210
    %v276 = vunpack.c.l.b16 %v146
    %v277 = vunpack.c.h.b16 %v146
    %v278 = vunpack.c.l.b16 %v147
    %v279 = vunpack.c.h.b16 %v147
    %v280 = vunpack.c.l.b16 %v148
    %v281 = vunpack.c.h.b16 %v148
    %v282 = vunpack.c.l.b16 %v149
    %v283 = vunpack.c.h.b16 %v149
    %v284 = vunpack.c.l.b16 %v150
    %v285 = vunpack.c.h.b16 %v150
    %v286 = vunpack.c.l.b16 %v151
    %v287 = vunpack.c.h.b16 %v151
    %v288 = vunpack.c.l.b16 %v152
    %v289 = vunpack.c.h.b16 %v152
    %v290 = vunpack.c.l.b16 %v153
    %v291 = vunpack.c.h.b16 %v153
    %v292 = vunpack.c.l.b16 %v154
    %v293 = vunpack.c.h.b16 %v154
    %v294 = vunpack.c.l.b16 %v155
    %v295 = vunpack.c.h.b16 %v155
    %v296 = vunpack.c.l.b16 %v156
    %v297 = vunpack.c.h.b16 %v156
    %v298 = vunpack.c.l.b16 %v157
    %v299 = vunpack.c.h.b16 %v157
    %v300 = vunpack.c.l.b16 %v158
    %v301 = vunpack.c.h.b16 %v158
    %v302 = vunpack.c.l.b16 %v159
    %v303 = vunpack.c.h.b16 %v159
    %v304 = vunpack.c.l.b16 %v160
    %v305 = vunpack.c.h.b16 %v160
    %v306 = vunpack.c.l.b16 %v161
    %v307 = vunpack.c.h.b16 %v161
    %v308 = vunpack.c.l.b16 %v162
    %v309 = vunpack.c.h.b16 %v162
    %v310 = vunpack.c.l.b16 %v163
    %v311 = vunpack.c.h.b16 %v163
    %v312 = vunpack.c.l.b16 %v164
    %v313 = vunpack.c.h.b16 %v164
    %v314 = vunpack.c.l.b16 %v165
    %v315 = vunpack.c.h.b16 %v165
    %v316 = vunpack.c.l.b16 %v166
    %v317 = vunpack.c.h.b16 %v166
    %v318 = vunpack.c.l.b16 %v167
    %v319 = vunpack.c.h.b16 %v167
    %v320 = vunpack.c.l.b16 %v168
    %v321 = vunpack.c.h.b16 %v168
    %v322 = vunpack.c.l.b16 %v169
    %v323 = vunpack.c.h.b16 %v169
    %v324 = vunpack.c.l.b16 %v170
    %v325 = vunpack.c.h.b16 %v170
    %v326 = vunpack.c.l.b16 %v171
    %v327 = vunpack.c.h.b16 %v171
    %v328 = vunpack.c.l.b16 %v172
    %v329 = vunpack.c.h.b16 %v172
    %v330 = vunpack.c.l.b16 %v173
    %v331 = vunpack.c.h.b16 %v173
    %v332 = vunpack.c.l.b16 %v174
    %v333 = vunpack.c.h.b16 %v174
    %v334 = vunpack.c.l.b16 %v175
    %v335 = vunpack.c.h.b16 %v175
    %v336 = vunpack.c.l.b16 %v176
    %v337 = vunpack.c.h.b16 %v176
    %v338 = vunpack.c.l.b16 %v177
    %v339 = vunpack.c.h.b16 %v177
    %v340 = vunpack.c.l.b16 %v178
    %v341 = vunpack.c.h.b16 %v178
    %v342 = vunpack.c.l.b16 %v179
    %v343 = vunpack.c.h.b16 %v179
    %v344 = vunpack.c.l.b16 %v180
    %v345 = vunpack.c.h.b16 %v180
    %v346 = vunpack.c.l.b16 %v181
    %v347 = vunpack.c.h.b16 %v181
    %v348 = vunpack.c.l.b16 %v182
    %v349 = vunpack.c.h.b16 %v182
    %v350 = vunpack.c.l.b16 %v183
    %v351 = vunpack.c.h.b16 %v183
    %v352 = vunpack.c.l.b16 %v184
    %v353 = vunpack.c.h.b16 %v184
    %v354 = vunpack.c.l.b16 %v185
    %v355 = vunpack.c.h.b16 %v185
    %v356 = vunpack.c.l.b16 %v186
    %v357 = vunpack.c.h.b16 %v186
    %v358 = vunpack.c.l.b16 %v187
    %v359 = vunpack.c.h.b16 %v187
    %v360 = vunpack.c.l.b16 %v188
    %v361 = vunpack.c.h.b16 %v188
    %v362 = vunpack.c.l.b16 %v189
    %v363 = vunpack.c.h.b16 %v189
    %v364 = vunpack.c.l.b16 %v190
    %v365 = vunpack.c.h.b16 %v190
    %v366 = vunpack.c.l.b16 %v191
    %v367 = vunpack.c.h.b16 %v191
    %v368 = vunpack.c.l.b16 %v192
    %v369 = vunpack.c.h.b16 %v192
    %v370 = vunpack.c.l.b16 %v193
    %v371 = vunpack.c.h.b16 %v193
    %v372 = vunpack.c.l.b16 %v194
    %v373 = vunpack.c.h.b16 %v194
    %v374 = vunpack.c.l.b16 %v195
    %v375 = vunpack.c.h.b16 %v195
    %v376 = vunpack.c.l.b16 %v196
    %v377 = vunpack.c.h.b16 %v196
    %v378 = vunpack.c.l.b16 %v197
    %v379 = vunpack.c.h.b16 %v197
    %v380 = vunpack.c.l.b16 %v198
    %v381 = vunpack.c.h.b16 %v198
    %v382 = vunpack.c.l.b16 %v199
    %v383 = vunpack.c.h.b16 %v199
    %v384 = vunpack.c.l.b16 %v200
    %v385 = vunpack.c.h.b16 %v200
    %v386 = vunpack.c.l.b16 %v201
    %v387 = vunpack.c.h.b16 %v201
    %v388 = vunpack.c.l.b16 %v202
    %v389 = vunpack.c.h.b16 %v202
    %v390 = vunpack.c.l.b16 %v203
    %v391 = vunpack.c.h.b16 %v203
    %v392 = vunpack.c.l.b16 %v204
    %v393 = vunpack.c.h.b16 %v204
    %v394 = vunpack.c.l.b16 %v205
    %v395 = vunpack.c.h.b16 %v205
    %v396 = vunpack.c.l.b16 %v206
    %v397 = vunpack.c.h.b16 %v206
    %v398 = vunpack.c.l.b16 %v207
    %v399 = vunpack.c.h.b16 %v207
    %v400 = vunpack.c.l.b16 %v208
    %v401 = vunpack.c.h.b16 %v208
    %v402 = vunpack.c.l.b16 %v209
    %v403 = vunpack.c.h.b16 %v209
    %v404 = vpack.c.b16 %v278, %v276
    %v405 = vpack.c.b16 %v279, %v277
    %v406 = vpack.c.b16 %v282, %v280
    %v407 = vpack.c.b16 %v283, %v281
    %v408 = vpack.c.b16 %v286, %v284
    %v409 = vpack.c.b16 %v287, %v285
    %v410 = vpack.c.b16 %v290, %v288
    %v411 = vpack.c.b16 %v291, %v289
    %v412 = vpack.c.b16 %v294, %v292
    %v413 = vpack.c.b16 %v295, %v293
    %v414 = vpack.c.b16 %v298, %v296
    %v415 = vpack.c.b16 %v299, %v297
    %v416 = vpack.c.b16 %v302, %v300
    %v417 = vpack.c.b16 %v303, %v301
    %v418 = vpack.c.b16 %v306, %v304
    %v419 = vpack.c.b16 %v307, %v305
    %v420 = vpack.c.b16 %v310, %v308
    %v421 = vpack.c.b16 %v311, %v309
    %v422 = vpack.c.b16 %v314, %v312
    %v423 = vpack.c.b16 %v315, %v313
    %v424 = vpack.c.b16 %v318, %v316
    %v425 = vpack.c.b16 %v319, %v317
    %v426 = vpack.c.b16 %v322, %v320
    %v427 = vpack.c.b16 %v323, %v321
    %v428 = vpack.c.b16 %v326, %v324
    %v429 = vpack.c.b16 %v327, %v325
    %v430 = vpack.c.b16 %v330, %v328
    %v431 = vpack.c.b16 %v331, %v329
    %v432 = vpack.c.b16 %v334, %v332
    %v433 = vpack.c.b16 %v335, %v333
    %v434 = vpack.c.b16 %v338, %v336
    %v435 = vpack.c.b16 %v339, %v337
    %v436 = vpack.c.b16 %v342, %v340
    %v437 = vpack.c.b16 %v343, %v341
    %v438 = vpack.c.b16 %v346, %v344
    %v439 = vpack.c.b16 %v347, %v345
    %v440 = vpack.c.b16 %v350, %v348
    %v441 = vpack.c.b16 %v351, %v349
    %v442 = vpack.c.b16 %v354, %v352
    %v443 = vpack.c.b16 %v355, %v353
    %v444 = vpack.c.b16 %v358, %v356
    %v445 = vpack.c.b16 %v359, %v357
    %v446 = vpack.c.b16 %v362, %v360
    %v447 = vpack.c.b16 %v363, %v361
    %v448 = vpack.c.b16 %v366, %v364
    %v449 = vpack.c.b16 %v367, %v365
    %v450 = vpack.c.b16 %v370, %v368
    %v451 = vpack.c.b16 %v371, %v369
    %v452 = vpack.c.b16 %v374, %v372
    %v453 = vpack.c.b16 %v375, %v373
    %v454 = vpack.c.b16 %v378, %v376
    %v455 = vpack.c.b16 %v379, %v377
    %v456 = vpack.c.b16 %v382, %v380
    %v457 = vpack.c.b16 %v383, %v381
    %v458 = vpack.c.b16 %v386, %v384
    %v459 = vpack.c.b16 %v387, %v385
    %v460 = vpack.c.b16 %v390, %v388
    %v461 = vpack.c.b16 %v391, %v389
    %v462 = vpack.c.b16 %v394, %v392
    %v463 = vpack.c.b16 %v395, %v393
    %v464 = vpack.c.b16 %v398, %v396
    %v465 = vpack.c.b16 %v399, %v397
    %v466 = vpack.c.b16 %v402, %v400
    %v467 = vpack.c.b16 %v403, %v401
    %532 = vmatprep.subr.bf16.mxu0 %v405
    %533 = vmatpush1.bf16.msra.mxu0 %v404
    %534 = vmatprep.subr.bf16.mxu0 %v407
    %535 = vmatpush1.bf16.msra.mxu0 %v406
    %536 = vmatprep.subr.bf16.mxu0 %v409
    %537 = vmatpush1.bf16.msra.mxu0 %v408
    %538 = vmatprep.subr.bf16.mxu0 %v411
    %539 = vmatpush1.bf16.msra.mxu0 %v410
    %540 = vmatprep.subr.bf16.mxu0 %v413
    %541 = vmatpush1.bf16.msra.mxu0 %v412
    %542 = vmatprep.subr.bf16.mxu0 %v415
    %543 = vmatpush1.bf16.msra.mxu0 %v414
    %544 = vmatprep.subr.bf16.mxu0 %v417
    %545 = vmatpush1.bf16.msra.mxu0 %v416
    %546 = vmatprep.subr.bf16.mxu0 %v419
    %547 = vmatpush1.bf16.msra.mxu0 %v418
    %548 = vmatprep.subr.bf16.mxu0 %v421
    %549 = vmatpush1.bf16.msra.mxu0 %v420
    %550 = vmatprep.subr.bf16.mxu0 %v423
    %551 = vmatpush1.bf16.msra.mxu0 %v422
    %552 = vmatprep.subr.bf16.mxu0 %v425
    %553 = vmatpush1.bf16.msra.mxu0 %v424
    %554 = vmatprep.subr.bf16.mxu0 %v427
    %555 = vmatpush1.bf16.msra.mxu0 %v426
    %556 = vmatprep.subr.bf16.mxu0 %v429
    %557 = vmatpush1.bf16.msra.mxu0 %v428
    %558 = vmatprep.subr.bf16.mxu0 %v431
    %559 = vmatpush1.bf16.msra.mxu0 %v430
    %560 = vmatprep.subr.bf16.mxu0 %v433
    %561 = vmatpush1.bf16.msra.mxu0 %v432
    %562 = vmatprep.subr.bf16.mxu0 %v435
    %563 = vmatpush1.bf16.msra.mxu0 %v434
    %564 = vmatprep.mubr.bf16.mxu0 %v129
    %565 = vmatmul.mubr.bf16.gmra.mrb[0].mxu0 %v128
    %v566 = vpop.f32.mrb[0].mxu0
    %v567 = vadd.f32 %v211, %v566
    %v568 = vpop.f32.mrb[0].mxu0
    %v569 = vadd.f32 %v211, %v568
    %v570 = vpop.f32.mrb[0].mxu0
    %v571 = vpop.f32.mrb[0].mxu0
    %572 = vdwg.mxu0
    %573 = vmatprep.subr.bf16.mxu0 %v437
    %574 = vmatpush1.bf16.msra.mxu0 %v436
    %575 = vmatprep.subr.bf16.mxu0 %v439
    %576 = vmatpush1.bf16.msra.mxu0 %v438
    %577 = vmatprep.subr.bf16.mxu0 %v441
    %578 = vmatpush1.bf16.msra.mxu0 %v440
    %579 = vmatprep.subr.bf16.mxu0 %v443
    %580 = vmatpush1.bf16.msra.mxu0 %v442
    %581 = vmatprep.subr.bf16.mxu0 %v445
    %582 = vmatpush1.bf16.msra.mxu0 %v444
    %583 = vmatprep.subr.bf16.mxu0 %v447
    %584 = vmatpush1.bf16.msra.mxu0 %v446
    %585 = vmatprep.subr.bf16.mxu0 %v449
    %586 = vmatpush1.bf16.msra.mxu0 %v448
    %587 = vmatprep.subr.bf16.mxu0 %v451
    %588 = vmatpush1.bf16.msra.mxu0 %v450
    %589 = vmatprep.subr.bf16.mxu0 %v453
    %590 = vmatpush1.bf16.msra.mxu0 %v452
    %591 = vmatprep.subr.bf16.mxu0 %v455
    %592 = vmatpush1.bf16.msra.mxu0 %v454
    %593 = vmatprep.subr.bf16.mxu0 %v457
    %594 = vmatpush1.bf16.msra.mxu0 %v456
    %595 = vmatprep.subr.bf16.mxu0 %v459
    %596 = vmatpush1.bf16.msra.mxu0 %v458
    %597 = vmatprep.subr.bf16.mxu0 %v461
    %598 = vmatpush1.bf16.msra.mxu0 %v460
    %599 = vmatprep.subr.bf16.mxu0 %v463
    %600 = vmatpush1.bf16.msra.mxu0 %v462
    %601 = vmatprep.subr.bf16.mxu0 %v465
    %602 = vmatpush1.bf16.msra.mxu0 %v464
    %603 = vmatprep.subr.bf16.mxu0 %v467
    %604 = vmatpush1.bf16.msra.mxu0 %v466
    %605 = vmatprep.mubr.bf16.mxu0 %v143
    %606 = vmatmul.mubr.bf16.gmra.mrb[0].mxu0 %v142
    %v607 = vpop.f32.mrb[0].mxu0
    %v608 = vadd.f32 %v567, %v607
    %v609 = vpop.f32.mrb[0].mxu0
    %v610 = vadd.f32 %v569, %v609
    %v611 = vpop.f32.mrb[0].mxu0
    %v612 = vpop.f32.mrb[0].mxu0
    %613 = vdwg.mxu0
    %v614 = vxor.u32 %v608, 2147483648
    %v615 = vxor.u32 %v610, 2147483648
    %v616 = vmul.f32 %v614, 1.442695
    %v617 = vpow.pop %v616
    %v618 = vmul.f32 %v615, 1.442695
    %v619 = vpow.pop %v618
    %v620 = vadd.f32 %v617, 1.0
    %v621 = vadd.f32 %v619, 1.0
    %v622 = vrcp.pop %v620
    %v623 = vmul.f32 1.0, %v622
    %v624 = vrcp.pop %v621
    %v625 = vmul.f32 1.0, %v624
    %v628 = vcombine.low %v623, %v625
    %v630 = vunpack.c.l.s4 1966171168
    %v631 = vunpack.c.0.s8 %v630
    %v632 = vlaneseq
    %v633 = vshrl.u32 %v632, 7
    %v634 = vsub.s32 %v631, %v633
    %v635 = vrot.slane %v628, %v634
    %v636 = vcombine.high %v635, %v635
    %v638 = vunpack.c.l.s4 1966171168
    %v639 = vunpack.c.0.s8 %v638
    %v640 = vlaneseq
    %v641 = vshrl.u32 %v640, 7
    %v642 = vsub.s32 %v639, %v641
    %v643 = vrot.slane %v635, %v642
    %v645 = vunpack.c.l.s4 1966171168
    %v646 = vunpack.c.0.s8 %v645
    %v647 = vlaneseq
    %v648 = vshrl.u32 %v647, 7
    %v649 = vsub.s32 %v646, %v648
    %v650 = vrot.slane %v636, %v649
    %v651 = vlaneseq
    %v652 = vshrl.u32 %v651, 7
    %v653 = vsub.s32 0, %v652
    %v654 = vrot.slane %v643, %v653
    %v655 = vlaneseq
    %v656 = vshrl.u32 %v655, 7
    %v657 = vsub.s32 1, %v656
    %v658 = vrot.slane %v643, %v657
    %v659 = vlaneseq
    %v660 = vshrl.u32 %v659, 7
    %v661 = vsub.s32 0, %v660
    %v662 = vrot.slane %v650, %v661
    %v663 = vlaneseq
    %v664 = vshrl.u32 %v663, 7
    %v665 = vsub.s32 1, %v664
    %v666 = vrot.slane %v650, %v665
    %v667 = vcombine.low %v654, %v658
    %v668 = vcombine.low %v662, %v666
    %v671 = vmul.f32 %v44, %v667
    %v672 = vmul.f32 %v45, %v668
    %673 = vst [vmem:[#allocation8] sm:$0xff] %v671
    %674 = vst [vmem:[#allocation8 + $0x8] sm:$0xff] %v672
    // Predicated region
    $region22: #{tpu_custom_call.1} parent=1 // pred_check
      _
    $region23: #{tpu_custom_call.1} parent=1 // pred_check_branch
      %676 = sbr.rel (0) target = $region25
    $region24: #{tpu_custom_call.1} parent=1 // pred_region
      %s678 = ssub.s32 256, 256
      %679 = vsyncadd [#allocation5], %s678
      %s680 = sshll.u32 [#allocation8], 4
      %s681 = int_to_ptr.vmem [resolvable:$true] %s680
      %686 = dma.vmem_to_hbm [thread:$0]  %s681, 256, %s3, [#allocation5], 128, 128, 8
    $region25: #{tpu_custom_call.1} parent=1 // pred_fallthru
      _
    // Predicated region
    $region26: #{tpu_custom_call.1} parent=1 // pred_check
      _
    $region27: #{tpu_custom_call.1} parent=1 // pred_check_branch
      %688 = sbr.rel (0) target = $region29
    $region28: #{tpu_custom_call.1} parent=1 // pred_region
      %689 = dma.done [#allocation5], 256
    $region29: #{tpu_custom_call.1} parent=1 // pred_fallthru
      _
    %690 = vsyncpa [#allocation4], 1
    %691 = vsyncpa [#allocation7], 1
    %692 = vsyncpa [#allocation5], 1

</llo_original>
